<compile_context>
chip_gen: v5e
topology: v5e:2x2
jax: 0.10.0
libtpu: 0.0.40
codegen_flags: <defaults>
</compile_context>

<pallas_src>
import functools

import jax
import jax.numpy as jnp
from jax.experimental import pallas as pl
from jax.experimental.pallas import tpu as pltpu

_NEG_INF = -1e30  # padded-logit fill; exp(-1e30 - max) == 0, never the row max


def _round_up(x, m):
    return (x + m - 1) // m * m


def _tpu_vmem_capacity_bytes():
    """Per-core VMEM capacity; conservative 64 MiB (v7x per-TC) fallback."""
    try:
        return int(pltpu.get_tpu_info().vmem_capacity_bytes)
    except Exception:
        return 64 * 2**20


def _decoder_kernel(x_ref, w_ref, b_ref, labels_ref,
                    logits_ref, loss_ref, cnt_ref):
    """Per-tile kernel: linear projection + per-block masked CE partials.

    x_ref:      [TILE_N, H]       x.dtype (bf16 or f32)
    w_ref:      [H, L_PAD]        x.dtype (resident)
    b_ref:      [1, L_PAD]        f32     (resident; padded lanes = -1e30)
    labels_ref: [TILE_N, 1]       i32     (ignore_index -100 already folded in)
    logits_ref: [TILE_N, L_PAD]   x.dtype (lane-dense output tile)
    loss_ref:   [1, 1, 128]       f32     (this block's loss sum, broadcast)
    cnt_ref:    [1, 1, 128]       f32     (this block's active-token count)
    """
    # ---- hot path: MXU matmul (native-dtype inputs, f32 accumulation) ----
    logits = jnp.dot(x_ref[...], w_ref[...],
                     preferred_element_type=jnp.float32) + b_ref[...]
    logits_ref[...] = logits.astype(logits_ref.dtype)

    # ---- masked cross-entropy partials (f32, PyTorch CrossEntropyLoss) ----
    tn, lp = logits.shape
    labels = labels_ref[...]                                   # [TILE_N, 1]

    row_max = jnp.max(logits, axis=-1, keepdims=True)          # [TILE_N, 1]
    lse = row_max + jnp.log(
        jnp.sum(jnp.exp(logits - row_max), axis=-1, keepdims=True))

    # gather logit at the label index via one-hot compare (no dynamic gather)
    col = jax.lax.broadcasted_iota(jnp.int32, (tn, lp), 1)
    onehot = col == labels
    label_logit = jnp.sum(jnp.where(onehot, logits, 0.0),
                          axis=-1, keepdims=True)              # [TILE_N, 1]
    per_token_nll = lse - label_logit

    active = labels >= 0          # ignore_index (-100) / padding -> inactive
    loss_blk = jnp.sum(jnp.where(active, per_token_nll, 0.0),
                       keepdims=True)                           # (1, 1)
    cnt_blk = jnp.sum(active.astype(jnp.float32), keepdims=True)

    loss_ref[...] = jnp.broadcast_to(loss_blk, (1, 1, 128))
    cnt_ref[...] = jnp.broadcast_to(cnt_blk, (1, 1, 128))


@functools.partial(jax.jit, static_argnames=("num_labels",))
def token_classification_decoder(sequence_output, attention_mask, labels,
                                 weight_t, bias, *, num_labels):
    """JAX wrapper reproducing TokenClassificationDecoder.forward (eval mode).

    sequence_output: [B, S, H]  (f32 or bf16 — NOT upcast)
    attention_mask:  [B, S] int (1 = active token)
    labels:          [B, S] int
    weight_t:        [H, L]     (transposed nn.Linear weight)
    bias:            [L]
    Returns (logits [B, S, L] in sequence_output.dtype, loss scalar f32).

    Note: loss is 0.0 (not NaN) when every token is masked, via max(count, 1).
    """
    b, s, h = sequence_output.shape
    n = b * s
    l = num_labels
    l_pad = _round_up(l, 128)                  # lane-dense logits width

    x_dtype = sequence_output.dtype            # keep bf16 as bf16
    x_bytes = jnp.dtype(x_dtype).itemsize
    out_dtype = x_dtype                        # logits written in activation dtype
    out_bytes = jnp.dtype(out_dtype).itemsize
    sub = 16 if x_bytes < 4 else 8             # native sublane tile for packed dtypes

    # ---- generation-aware token tile / VMEM budget -------------------------
    vmem_cap = _tpu_vmem_capacity_bytes()
    budget = min(vmem_cap // 2, 64 * 2**20)    # <= 50% of physical VMEM
    fixed = (2 * h * l_pad * x_bytes           # resident weight (double-buffered)
             + 2 * 8 * l_pad * 4               # bias (sublane-padded)
             + 2 * 2 * 8 * 128 * 4             # per-block stat output tiles
             + (1 << 20))                      # compiler-internal slack
    # per token row, double-buffered: x row + logits row + lane-padded labels
    per_row = 2 * (h * x_bytes + l_pad * out_bytes + 128 * 4)
    avail = max(budget - fixed, per_row * sub)
    tile_cap = max(sub, min(2048, (avail // per_row) // sub * sub))

    if n <= tile_cap:
        tile_n = _round_up(n, sub)             # single block, no wasted rows
    else:
        tile_n = tile_cap
        lo = max(sub, tile_cap // 2)
        for cand in range(tile_cap, lo - 1, -sub):   # prefer a divisor of n
            if n % cand == 0:
                tile_n = cand
                break
    n_pad = _round_up(n, tile_n)
    num_blocks = n_pad // tile_n

    vmem_est = fixed + per_row * tile_n
    vmem_limit = int(min(max(vmem_est + (4 << 20), 16 * 2**20), budget))
    vmem_limit = max(vmem_limit, vmem_est)

    # ---- operand preparation ------------------------------------------------
    x2d = sequence_output.reshape(n, h)
    # fold attention_mask into labels (PyTorch ignore_index = -100)
    lab = jnp.where(attention_mask.reshape(n) == 1,
                    labels.reshape(n).astype(jnp.int32),
                    jnp.int32(-100))
    if n_pad != n:
        x2d = jnp.pad(x2d, ((0, n_pad - n), (0, 0)))
        lab = jnp.pad(lab, (0, n_pad - n), constant_values=-100)
    lab = lab.reshape(n_pad, 1)

    # pad weight/bias to the lane-dense width; padded bias lanes are -1e30 so
    # padded logit columns are no-ops in row_max / exp-sum.
    w_pad = jnp.zeros((h, l_pad), dtype=x_dtype).at[:, :l].set(
        weight_t.astype(x_dtype))
    b_pad = jnp.full((1, l_pad), _NEG_INF, dtype=jnp.float32).at[0, :l].set(
        bias.astype(jnp.float32))

    cost = pl.CostEstimate(
        flops=2 * n_pad * h * l_pad,
        transcendentals=n_pad * l_pad,
        bytes_accessed=(n_pad * h * x_bytes            # x read (dominant)
                        + n_pad * l_pad * out_bytes    # logits write
                        + h * l_pad * x_bytes          # weight
                        + n_pad * 4 + l_pad * 4        # labels + bias
                        + 2 * num_blocks * 128 * 4))   # partial stats

    logits_pad, loss_parts, cnt_parts = pl.pallas_call(
        _decoder_kernel,
        out_shape=(
            jax.ShapeDtypeStruct((n_pad, l_pad), out_dtype),
            jax.ShapeDtypeStruct((num_blocks, 1, 128), jnp.float32),
            jax.ShapeDtypeStruct((num_blocks, 1, 128), jnp.float32),
        ),
        grid=(num_blocks,),
        in_specs=[
            pl.BlockSpec((tile_n, h), lambda i: (i, 0)),       # x tile
            pl.BlockSpec((h, l_pad), lambda i: (0, 0)),        # weight (resident)
            pl.BlockSpec((1, l_pad), lambda i: (0, 0)),        # bias (resident)
            pl.BlockSpec((tile_n, 1), lambda i: (i, 0)),       # labels tile
        ],
        out_specs=(
            pl.BlockSpec((tile_n, l_pad), lambda i: (i, 0)),   # logits tile
            pl.BlockSpec((1, 1, 128), lambda i: (i, 0, 0)),    # partial loss
            pl.BlockSpec((1, 1, 128), lambda i: (i, 0, 0)),    # partial count
        ),
        compiler_params=pltpu.CompilerParams(
            dimension_semantics=("parallel",),                 # v7x: 2 TCs
            vmem_limit_bytes=vmem_limit),
        cost_estimate=cost,
    )(x2d, w_pad, b_pad, lab)

    logits = logits_pad[:n, :l].reshape(b, s, l)
    loss_sum = jnp.sum(loss_parts[:, 0, 0])
    cnt = jnp.sum(cnt_parts[:, 0, 0])
    # guard 0/0 (all tokens ignored) -> 0.0 instead of PyTorch's NaN
    loss = loss_sum / jnp.maximum(cnt, 1.0)
    return logits, loss


def _reference(sequence_output, attention_mask, labels, weight_t, bias):
    """Pure-JAX reference matching the PyTorch forward (eval mode)."""
    logits = jnp.einsum("bsh,hl->bsl", sequence_output, weight_t) + bias
    l = logits.shape[-1]
    flat_logits = logits.reshape(-1, l)
    flat_labels = jnp.where(attention_mask.reshape(-1) == 1,
                            labels.reshape(-1), -100)
    lse = jax.nn.logsumexp(flat_logits, axis=-1)
    safe_labels = jnp.clip(flat_labels, 0, l - 1)
    picked = jnp.take_along_axis(flat_logits, safe_labels[:, None], axis=-1)[:, 0]
    nll = lse - picked
    active = flat_labels != -100
    loss = jnp.sum(jnp.where(active, nll, 0.0)) / jnp.sum(active.astype(jnp.float32))
    return logits, loss


if __name__ == "__main__":
    # Small shapes consistent with the module: batch=2, seq=8, hidden=32, labels=5.
    B, S, H, NUM_LABELS = 2, 8, 32, 5

    key = jax.random.PRNGKey(0)
    k_x, k_w, k_b, k_lab, k_msk = jax.random.split(key, 5)

    sequence_output = jax.random.normal(k_x, (B, S, H), dtype=jnp.float32)
    # Deterministic "nn.Linear(hidden_size, num_labels)" params (synthetic init).
    weight_t = (jax.random.normal(k_w, (H, NUM_LABELS), dtype=jnp.float32)
                / jnp.sqrt(H))
    bias = jax.random.normal(k_b, (NUM_LABELS,), dtype=jnp.float32) * 0.01
    labels = jax.random.randint(k_lab, (B, S), 0, NUM_LABELS, dtype=jnp.int32)
    # attention_mask: mostly ones, with a few padding zeros.
    attention_mask = (jax.random.uniform(k_msk, (B, S)) > 0.2).astype(jnp.int32)

    # ---- f32 path: exact check against the pure-JAX reference ----
    logits, loss = token_classification_decoder(
        sequence_output, attention_mask, labels, weight_t, bias,
        num_labels=NUM_LABELS)
    jax.block_until_ready((logits, loss))

    ref_logits, ref_loss = _reference(sequence_output, attention_mask, labels,
                                      weight_t, bias)
    assert jnp.allclose(logits, ref_logits, atol=1e-5, rtol=1e-5)
    assert jnp.allclose(loss, ref_loss, atol=1e-5, rtol=1e-5)

    # ---- bf16 activation path (logits now emitted in bf16): compare against ----
    # ---- a reference computed on the same bf16-rounded operands.            ----
    seq_bf16 = sequence_output.astype(jnp.bfloat16)
    logits_bf, loss_bf = token_classification_decoder(
        seq_bf16, attention_mask, labels, weight_t, bias,
        num_labels=NUM_LABELS)
    jax.block_until_ready((logits_bf, loss_bf))
    assert logits_bf.dtype == jnp.bfloat16

    ref_logits_bf, ref_loss_bf = _reference(
        seq_bf16.astype(jnp.float32), attention_mask, labels,
        weight_t.astype(jnp.bfloat16).astype(jnp.float32), bias)
    assert jnp.allclose(logits_bf.astype(jnp.float32), ref_logits_bf,
                        atol=2e-2, rtol=2e-2)
    assert jnp.allclose(loss_bf, ref_loss_bf, atol=2e-2, rtol=2e-2)

    print("KERNEL_OK")
</pallas_src>

<mosaic_0001>
module attributes {stable_mosaic.version = 11 : i64} {
  func.func @_decoder_kernel(%arg0: i32, %arg1: memref<16x32xf32, #tpu.memory_space<vmem>>, %arg2: memref<32x128xf32, #tpu.memory_space<vmem>>, %arg3: memref<1x128xf32, #tpu.memory_space<vmem>>, %arg4: memref<16x1xi32, #tpu.memory_space<vmem>>, %arg5: memref<16x128xf32, #tpu.memory_space<vmem>>, %arg6: memref<1x1x128xf32, #tpu.memory_space<vmem>>, %arg7: memref<1x1x128xf32, #tpu.memory_space<vmem>>) attributes {dimension_semantics = [#tpu.dimension_semantics<parallel>], iteration_bounds = array<i64: 1>, scalar_prefetch = 0 : i64, scratch_operands = 0 : i64, tpu.core_type = #tpu.core_type<tc>, window_params = [{transform_indices = @transform_0, window_bounds = array<i64: 16, 32>}, {pipeline_mode = #tpu.pipeline_mode<synchronous>, transform_indices = @transform_1, window_bounds = array<i64: 32, 128>}, {pipeline_mode = #tpu.pipeline_mode<synchronous>, transform_indices = @transform_2, window_bounds = array<i64: 1, 128>}, {transform_indices = @transform_3, window_bounds = array<i64: 16, 1>}, {transform_indices = @transform_4, window_bounds = array<i64: 16, 128>}, {transform_indices = @transform_5, window_bounds = array<i64: 1, 1, 128>}, {transform_indices = @transform_6, window_bounds = array<i64: 1, 1, 128>}]} {
    %c0 = arith.constant 0 : index
    %c0_0 = arith.constant 0 : index
    %0 = vector.load %arg1[%c0, %c0_0] : memref<16x32xf32, #tpu.memory_space<vmem>>, vector<16x32xf32>
    %c0_1 = arith.constant 0 : index
    %c0_2 = arith.constant 0 : index
    %1 = vector.load %arg2[%c0_1, %c0_2] : memref<32x128xf32, #tpu.memory_space<vmem>>, vector<32x128xf32>
    %cst = arith.constant dense<0.000000e+00> : vector<16x128xf32>
    %2 = tpu.matmul %0, %1, %cst {dimension_numbers = #tpu.dot_dimension_numbers<[1], [0], [0], [1], [0, 0, 1, 1], [], []>} : vector<16x32xf32>, vector<32x128xf32>, vector<16x128xf32> -> vector<16x128xf32>
    %c0_3 = arith.constant 0 : index
    %c0_4 = arith.constant 0 : index
    %3 = vector.load %arg3[%c0_3, %c0_4] : memref<1x128xf32, #tpu.memory_space<vmem>>, vector<1x128xf32>
    %4 = vector.broadcast %3 : vector<1x128xf32> to vector<16x128xf32>
    %5 = arith.addf %2, %4 : vector<16x128xf32>
    %c0_5 = arith.constant 0 : index
    %c0_6 = arith.constant 0 : index
    %6 = vector.load %arg5[%c0_5, %c0_6] : memref<16x128xf32, #tpu.memory_space<vmem>>, vector<16x128xf32>
    tpu.vector_store %arg5[%c0_5, %c0_6], %5 {strides = array<i32>} : memref<16x128xf32, #tpu.memory_space<vmem>>, vector<16x128xf32>,
    %c0_7 = arith.constant 0 : index
    %c0_8 = arith.constant 0 : index
    %7 = vector.load %arg4[%c0_7, %c0_8] : memref<16x1xi32, #tpu.memory_space<vmem>>, vector<16x1xi32>
    %cst_9 = arith.constant dense<0xFF800000> : vector<16xf32>
    %8 = vector.multi_reduction <maximumf>, %5, %cst_9 [1] : vector<16x128xf32> to vector<16xf32>
    %9 = vector.shape_cast %8 : vector<16xf32> to vector<16x1xf32>
    %10 = vector.broadcast %9 : vector<16x1xf32> to vector<16x128xf32>
    %11 = arith.subf %5, %10 : vector<16x128xf32>
    %12 = math.exp %11 : vector<16x128xf32>
    %cst_10 = arith.constant dense<0.000000e+00> : vector<16xf32>
    %13 = vector.multi_reduction <add>, %12, %cst_10 [1] : vector<16x128xf32> to vector<16xf32>
    %14 = vector.shape_cast %13 : vector<16xf32> to vector<16x1xf32>
    %15 = math.log %14 : vector<16x1xf32>
    %16 = arith.addf %9, %15 : vector<16x1xf32>
    %17 = tpu.iota {dimensions = array<i32: 1>} : vector<16x128xi32>
    %18 = vector.broadcast %7 : vector<16x1xi32> to vector<16x128xi32>
    %19 = arith.cmpi eq, %17, %18 : vector<16x128xi32>
    %cst_11 = arith.constant 0.000000e+00 : f32
    %20 = vector.broadcast %cst_11 : f32 to vector<16x128xf32>
    %21 = arith.select %19, %5, %20 : vector<16x128xi1>, vector<16x128xf32>
    %cst_12 = arith.constant dense<0.000000e+00> : vector<16xf32>
    %22 = vector.multi_reduction <add>, %21, %cst_12 [1] : vector<16x128xf32> to vector<16xf32>
    %23 = vector.shape_cast %22 : vector<16xf32> to vector<16x1xf32>
    %24 = arith.subf %16, %23 : vector<16x1xf32>
    %c0_i32 = arith.constant 0 : i32
    %25 = vector.broadcast %c0_i32 : i32 to vector<16x1xi32>
    %26 = arith.cmpi sge, %7, %25 : vector<16x1xi32>
    %cst_13 = arith.constant 0.000000e+00 : f32
    %27 = vector.broadcast %cst_13 : f32 to vector<16x1xf32>
    %28 = arith.select %26, %24, %27 : vector<16x1xi1>, vector<16x1xf32>
    %29 = vector.shape_cast %28 : vector<16x1xf32> to vector<1x16x1xf32>
    %cst_14 = arith.constant dense<0.000000e+00> : vector<1xf32>
    %30 = vector.multi_reduction <add>, %29, %cst_14 [1, 2] : vector<1x16x1xf32> to vector<1xf32>
    %31 = vector.shape_cast %30 : vector<1xf32> to vector<1x1x1xf32>
    %32 = vector.extract %31[0, 0, 0] : f32 from vector<1x1x1xf32>
    %33 = vector.broadcast %32 : f32 to vector<1x1xf32>
    %34 = arith.extui %26 : vector<16x1xi1> to vector<16x1xi32>
    %35 = arith.sitofp %34 : vector<16x1xi32> to vector<16x1xf32>
    %36 = vector.shape_cast %35 : vector<16x1xf32> to vector<1x16x1xf32>
    %cst_15 = arith.constant dense<0.000000e+00> : vector<1xf32>
    %37 = vector.multi_reduction <add>, %36, %cst_15 [1, 2] : vector<1x16x1xf32> to vector<1xf32>
    %38 = vector.shape_cast %37 : vector<1xf32> to vector<1x1x1xf32>
    %39 = vector.extract %38[0, 0, 0] : f32 from vector<1x1x1xf32>
    %40 = vector.broadcast %39 : f32 to vector<1x1xf32>
    %41 = vector.shape_cast %33 : vector<1x1xf32> to vector<1x1x1xf32>
    %42 = vector.broadcast %41 : vector<1x1x1xf32> to vector<1x1x128xf32>
    %c0_16 = arith.constant 0 : index
    %c0_17 = arith.constant 0 : index
    %c0_18 = arith.constant 0 : index
    %43 = vector.load %arg6[%c0_16, %c0_17, %c0_18] : memref<1x1x128xf32, #tpu.memory_space<vmem>>, vector<1x1x128xf32>
    tpu.vector_store %arg6[%c0_16, %c0_17, %c0_18], %42 {strides = array<i32>} : memref<1x1x128xf32, #tpu.memory_space<vmem>>, vector<1x1x128xf32>,
    %44 = vector.shape_cast %40 : vector<1x1xf32> to vector<1x1x1xf32>
    %45 = vector.broadcast %44 : vector<1x1x1xf32> to vector<1x1x128xf32>
    %c0_19 = arith.constant 0 : index
    %c0_20 = arith.constant 0 : index
    %c0_21 = arith.constant 0 : index
    %46 = vector.load %arg7[%c0_19, %c0_20, %c0_21] : memref<1x1x128xf32, #tpu.memory_space<vmem>>, vector<1x1x128xf32>
    tpu.vector_store %arg7[%c0_19, %c0_20, %c0_21], %45 {strides = array<i32>} : memref<1x1x128xf32, #tpu.memory_space<vmem>>, vector<1x1x128xf32>,
    return
  }
  func.func @transform_0(%arg0: i32) -> (i32, i32) {
    %c0_i32 = arith.constant 0 : i32
    %c0_i32_0 = arith.constant 0 : i32
    return %arg0, %c0_i32 : i32, i32
  }
  func.func @transform_1(%arg0: i32) -> (i32, i32) {
    %c0_i32 = arith.constant 0 : i32
    %c0_i32_0 = arith.constant 0 : i32
    %c0_i32_1 = arith.constant 0 : i32
    return %c0_i32, %c0_i32_0 : i32, i32
  }
  func.func @transform_2(%arg0: i32) -> (i32, i32) {
    %c0_i32 = arith.constant 0 : i32
    %c0_i32_0 = arith.constant 0 : i32
    %c0_i32_1 = arith.constant 0 : i32
    return %c0_i32, %c0_i32_0 : i32, i32
  }
  func.func @transform_3(%arg0: i32) -> (i32, i32) {
    %c0_i32 = arith.constant 0 : i32
    %c0_i32_0 = arith.constant 0 : i32
    return %arg0, %c0_i32 : i32, i32
  }
  func.func @transform_4(%arg0: i32) -> (i32, i32) {
    %c0_i32 = arith.constant 0 : i32
    %c0_i32_0 = arith.constant 0 : i32
    return %arg0, %c0_i32 : i32, i32
  }
  func.func @transform_5(%arg0: i32) -> (i32, i32, i32) {
    %c0_i32 = arith.constant 0 : i32
    %c0_i32_0 = arith.constant 0 : i32
    %c0_i32_1 = arith.constant 0 : i32
    return %arg0, %c0_i32, %c0_i32_0 : i32, i32, i32
  }
  func.func @transform_6(%arg0: i32) -> (i32, i32, i32) {
    %c0_i32 = arith.constant 0 : i32
    %c0_i32_0 = arith.constant 0 : i32
    %c0_i32_1 = arith.constant 0 : i32
    return %arg0, %c0_i32, %c0_i32_0 : i32, i32, i32
  }
}

</mosaic_0001>

<llo_original>
// kernel: token_classification_decoder.1
$region0: #{token_classification_decoder.1}
  #allocation0 [shape = 'u32[]', space=smem, size = 0x4, offset = 0x4, fixed_abs, tag = 'smem constant byte address 0x4 - core index']
  #allocation1 [shape = 'u32[72,128]{1,0:T(1,128)}', space=vmem, size = 0x9000, scoped, tag = 'internal scratch']
  %s0 = inlined_call_operand.vmem [shape: f32[16,32], index: 0, kind: input, shape index: {}]
  %s1 = inlined_call_operand.vmem [shape: f32[32,128], index: 1, kind: input, shape index: {}]
  %s2 = inlined_call_operand.vmem [shape: f32[1,128], index: 2, kind: input, shape index: {}]
  %s3 = inlined_call_operand.vmem [shape: s32[16,1], index: 3, kind: input, shape index: {}]
  %s4 = inlined_call_operand.vmem [shape: f32[16,128], index: 4, kind: output, shape index: {0}]
  %s5 = inlined_call_operand.vmem [shape: f32[1,1,128], index: 5, kind: output, shape index: {1}]
  %s6 = inlined_call_operand.vmem [shape: f32[1,1,128], index: 6, kind: output, shape index: {2}]
  %7 = xla_tuple %s4, %s5, %s6
  %s8 = sld [smem:[#allocation0]]
  $region42: #{token_classification_decoder.1} parent=0
    _
  %s10 = ssub.s32 1, %s8
  %s11 = scalar_select 0, %s10, %s8
  // Predicated region
  $region2: #{token_classification_decoder.1} parent=0 // pred_check
    _
  $region3: #{token_classification_decoder.1} parent=0 // pred_check_branch
    %13 = sbr.rel (0) target = $region5
  $region4: #{token_classification_decoder.1} parent=0 // pred_region
    _
  $region5: #{token_classification_decoder.1} parent=0 // pred_fallthru
    _
  // Predicated region
  $region6: #{token_classification_decoder.1} parent=0 // pred_check
    _
  $region7: #{token_classification_decoder.1} parent=0 // pred_check_branch
    %15 = sbr.rel (0) target = $region9
  $region8: #{token_classification_decoder.1} parent=0 // pred_region
    _
  $region9: #{token_classification_decoder.1} parent=0 // pred_fallthru
    _
  // Predicated region
  $region10: #{token_classification_decoder.1} parent=0 // pred_check
    _
  $region11: #{token_classification_decoder.1} parent=0 // pred_check_branch
    %17 = sbr.rel (0) target = $region13
  $region12: #{token_classification_decoder.1} parent=0 // pred_region
    _
  $region13: #{token_classification_decoder.1} parent=0 // pred_fallthru
    _
  // Predicated region
  $region14: #{token_classification_decoder.1} parent=0 // pred_check
    _
  $region15: #{token_classification_decoder.1} parent=0 // pred_check_branch
    %19 = sbr.rel (0) target = $region17
  $region16: #{token_classification_decoder.1} parent=0 // pred_region
    _
  $region17: #{token_classification_decoder.1} parent=0 // pred_fallthru
    _
  %v20 = vld [vmem:[%s0] sm:$0xff]
  %v21 = vld [vmem:[%s0 + $0x8] sm:$0xff]
  %v22 = vld [vmem:[%s1] sm:$0xff]
  %v23 = vld [vmem:[%s1 + $0x8] sm:$0xff]
  %v24 = vld [vmem:[%s1 + $0x10] sm:$0xff]
  %v25 = vld [vmem:[%s1 + $0x18] sm:$0xff]
  %v26 = vld [vmem:[%s2] sm:$0x1]
  %v28 = vperm.slane %v26, 0
  %vm30 = vcmask 261120
  %v32 = vsel %vm30, %v20, 0
  %v35 = vsel %vm30, %v21, 0
  %37 = vmatpush.msra.mxu0 0.0
  %38 = vmatpush.msra.mxu0 0.0
  %39 = vmatpush.msra.mxu0 0.0
  %40 = vmatpush.msra.mxu0 0.0
  %41 = vmatpush.msra.mxu0 0.0
  %42 = vmatpush.msra.mxu0 0.0
  %43 = vmatpush.msra.mxu0 0.0
  %44 = vmatpush.msra.mxu0 0.0
  %45 = vmatpush.msra.mxu0 0.0
  %46 = vmatpush.msra.mxu0 0.0
  %47 = vmatpush.msra.mxu0 0.0
  %48 = vmatpush.msra.mxu0 0.0
  %49 = vmatpush.msra.mxu0 %v25
  %50 = vmatpush.msra.mxu0 %v24
  %51 = vmatpush.msra.mxu0 %v23
  %52 = vmatpush.msra.mxu0 %v22
  %53 = vmatmul.f32.gmra.mxu0 %v32
  %v54 = vpop.f32.mrf.mxu0
  %v55 = vadd.f32 %v28, %v54
  %56 = vmatmul.f32.gmra.mxu0 %v35
  %v57 = vpop.f32.mrf.mxu0
  %v58 = vadd.f32 %v28, %v57
  %59 = vdwg.mxu0
  %60 = vst [vmem:[%s4] sm:$0xff] %v55
  %61 = vst [vmem:[%s4 + $0x8] sm:$0xff] %v58
  %v62 = vld [vmem:[%s3] sm:$0xff]
  %v63 = vld [vmem:[%s3 + $0x8] sm:$0xff]
  %64 = vmax.xlane.f32.xlu0 %v55
  %v65 = vpop.xlane.xlu0 %64
  %66 = vmax.xlane.f32.xlu0 %v58
  %v67 = vpop.xlane.xlu0 %66
  %v68 = vsub.f32 %v55, %v65
  %v69 = vsub.f32 %v58, %v67
  %v70 = vmul.f32 %v68, 1.442695
  %v71 = vpow.pop %v70
  %v72 = vmul.f32 %v69, 1.442695
  %v73 = vpow.pop %v72
  %74 = vadd.xlane.f32.xlu0 %v71
  %v75 = vpop.xlane.xlu0 %74
  %76 = vadd.xlane.f32.xlu0 %v73
  %v77 = vpop.xlane.xlu0 %76
  %v78 = vlog2.pop %v75
  %v79 = vmul.f32 %v78, 0.6931472
  %v80 = vlog2.pop %v77
  %v81 = vmul.f32 %v80, 0.6931472
  %v82 = vadd.f32 %v65, %v79
  %v83 = vadd.f32 %v67, %v81
  %v84 = vlaneseq
  %v85 = vand.u32 %v84, 127
  %86 = vset.pattern.permute.xlu0 0
  %87 = vperm.xlu0 %86, %v62
  %v88 = vpop.permute.xlu0 %87
  %89 = vset.pattern.permute.xlu0 0
  %90 = vperm.xlu0 %89, %v63
  %v91 = vpop.permute.xlu0 %90
  %vm92 = vcmp.eq.s32.totalorder %v85, %v88
  %vm93 = vcmp.eq.s32.totalorder %v85, %v91
  %v94 = vsel %vm92, %v55, 0.0
  %v95 = vsel %vm93, %v58, 0.0
  %96 = vadd.xlane.f32.xlu0 %v94
  %v97 = vpop.xlane.xlu0 %96
  %98 = vadd.xlane.f32.xlu0 %v95
  %v99 = vpop.xlane.xlu0 %98
  %v100 = vsub.f32 %v82, %v97
  %v101 = vsub.f32 %v83, %v99
  %vm102 = vcmp.ge.s32.totalorder %v62, 0
  %vm103 = vcmp.ge.s32.totalorder %v63, 0
  %v104 = vsel %vm102, %v100, 0.0
  %v105 = vsel %vm103, %v101, 0.0
  %vm106 = vcmask 7168
  %v107 = vsel %vm106, %v104, 0.0
  %v108 = vsel %vm106, %v105, 0.0
  %v109 = vadd.f32 %v107, %v108
  %110 = vadd.xlane.f32.xlu0 %v109
  %v111 = vpop.xlane.xlu0 %110
  %v112 = vrot.slane %v111, 4
  %v113 = vadd.f32 %v111, %v112
  %v114 = vrot.slane %v113, 2
  %v115 = vadd.f32 %v113, %v114
  %v116 = vrot.slane %v115, 1
  %v117 = vadd.f32 %v115, %v116
  %s118 = vtos %v117
  %v119 = vsel %vm102, 1, 0
  %v120 = vsel %vm103, 1, 0
  %v121 = vcvt.s32.f32 %v119
  %v122 = vcvt.s32.f32 %v120
  %v123 = vsel %vm106, %v121, 0.0
  %v124 = vsel %vm106, %v122, 0.0
  %v125 = vadd.f32 %v123, %v124
  %126 = vadd.xlane.f32.xlu0 %v125
  %v127 = vpop.xlane.xlu0 %126
  %v128 = vrot.slane %v127, 4
  %v129 = vadd.f32 %v127, %v128
  %v130 = vrot.slane %v129, 2
  %v131 = vadd.f32 %v129, %v130
  %v132 = vrot.slane %v131, 1
  %v133 = vadd.f32 %v131, %v132
  %s134 = vtos %v133
  %v135 = vstv %s118
  %136 = vst [vmem:[%s5] sm:$0x1] %v135
  %v137 = vstv %s134
  %138 = vst [vmem:[%s6] sm:$0x1] %v137
  // Predicated region
  $region18: #{token_classification_decoder.1} parent=0 // pred_check
    _
  $region19: #{token_classification_decoder.1} parent=0 // pred_check_branch
    %140 = sbr.rel (0) target = $region21
  $region20: #{token_classification_decoder.1} parent=0 // pred_region
    _
  $region21: #{token_classification_decoder.1} parent=0 // pred_fallthru
    _
  // Predicated region
  $region22: #{token_classification_decoder.1} parent=0 // pred_check
    _
  $region23: #{token_classification_decoder.1} parent=0 // pred_check_branch
    %142 = sbr.rel (0) target = $region25
  $region24: #{token_classification_decoder.1} parent=0 // pred_region
    _
  $region25: #{token_classification_decoder.1} parent=0 // pred_fallthru
    _
  // Predicated region
  $region26: #{token_classification_decoder.1} parent=0 // pred_check
    _
  $region27: #{token_classification_decoder.1} parent=0 // pred_check_branch
    %144 = sbr.rel (0) target = $region29
  $region28: #{token_classification_decoder.1} parent=0 // pred_region
    _
  $region29: #{token_classification_decoder.1} parent=0 // pred_fallthru
    _
  // Predicated region
  $region30: #{token_classification_decoder.1} parent=0 // pred_check
    _
  $region31: #{token_classification_decoder.1} parent=0 // pred_check_branch
    %146 = sbr.rel (0) target = $region33
  $region32: #{token_classification_decoder.1} parent=0 // pred_region
    _
  $region33: #{token_classification_decoder.1} parent=0 // pred_fallthru
    _
  // Predicated region
  $region34: #{token_classification_decoder.1} parent=0 // pred_check
    _
  $region35: #{token_classification_decoder.1} parent=0 // pred_check_branch
    %148 = sbr.rel (0) target = $region37
  $region36: #{token_classification_decoder.1} parent=0 // pred_region
    _
  $region37: #{token_classification_decoder.1} parent=0 // pred_fallthru
    _
  // Predicated region
  $region38: #{token_classification_decoder.1} parent=0 // pred_check
    _
  $region39: #{token_classification_decoder.1} parent=0 // pred_check_branch
    %150 = sbr.rel (0) target = $region41
  $region40: #{token_classification_decoder.1} parent=0 // pred_region
    _
  $region41: #{token_classification_decoder.1} parent=0 // pred_fallthru
    _

</llo_original>
